<compile_context>
chip_gen: v7x
topology: tpu7x:2x2x1
jax: 0.10.0
libtpu: 0.0.40
codegen_flags: <defaults>
</compile_context>

<pallas_src>
import math
import functools

import jax
import jax.numpy as jnp
from jax.experimental import pallas as pl
from jax.experimental.pallas import tpu as pltpu


def _round_up(n, m):
    return ((n + m - 1) // m) * m


# Batches at/above 2 * this row count are split into >=2 parallel grid steps so
# both v7x TensorCores are busy (harmless ~0.35us extra on single-TC v5e/v6e).
_MIN_ROWS_PER_CORE = 256


# ----------------------------------------------------------------------------
# Pallas kernel: fused dueling forward (3 matmuls, everything VMEM-resident)
# ----------------------------------------------------------------------------
def _noisy_dueling_kernel(x_ref, slab_ref, q_ref, *, s_pad):
    x = x_ref[...]                                     # (TB, s_pad), bf16 (ones col = bias)

    w1 = slab_ref[0:s_pad, :]                          # (s_pad, 128), row S carries b1
    w_mid = slab_ref[s_pad:s_pad + 128, :]             # (128, 128) = [Wv1 | Wa1]
    w_fin = slab_ref[s_pad + 128:s_pad + 256, :]       # (128, 128) fused dueling head
    biases = slab_ref[s_pad + 256:s_pad + 264, :]      # (8, 128): rows 0..1 used
    b_mid = biases[0:1, :].astype(jnp.float32)
    b_fin = biases[1:2, :].astype(jnp.float32)

    # feature = ReLU(x @ W1)          (layer-1 bias folded into W1 via ones column)
    h = jnp.maximum(jnp.dot(x, w1, preferred_element_type=jnp.float32), 0.0)
    # fused value||advantage hidden layer: ReLU(h @ [Wv1|Wa1] + [bv1|ba1])
    m = jnp.maximum(
        jnp.dot(h.astype(w_mid.dtype), w_mid, preferred_element_type=jnp.float32) + b_mid,
        0.0)
    # fused head: q = value + (adv - mean(adv)) folded into (W_fin, b_fin)
    q = jnp.dot(m.astype(w_fin.dtype), w_fin, preferred_element_type=jnp.float32) + b_fin
    q_ref[...] = q.astype(q_ref.dtype)


def noisy_dueling_forward(x, slab, num_actions, *, max_batch_tile=1024,
                          out_dtype=jnp.float32):
    """x: (B, num_states) float. slab: packed params from pack_params()."""
    B, S = x.shape
    n_rows = slab.shape[0]
    s_pad = n_rows - 264
    assert s_pad % 8 == 0 and s_pad >= S + 1, "slab was packed for a different num_states"

    # ---- batch tiling: pad to a multiple of 8 only, then pick fewest/biggest steps
    b8 = _round_up(max(B, 1), 8)
    n_steps = max(1, pl.cdiv(b8, max_batch_tile))
    if b8 >= 2 * _MIN_ROWS_PER_CORE:           # enough rows to feed both v7x TCs
        n_steps = max(n_steps, 2)
    if n_steps > 1 and n_steps % 2:
        n_steps += 1                           # even step count for 2-TC sharding
    tb = _round_up(pl.cdiv(b8, n_steps), 8)
    b_pad = tb * n_steps

    # pad state dim; set the ones-column that carries the folded layer-1 bias
    x_p = jnp.pad(x.astype(jnp.float32), ((0, b_pad - B), (0, s_pad - S)))
    x_p = x_p.at[:, S].set(1.0)
    x_p = x_p.astype(slab.dtype)               # bf16 operands for the MXU

    kernel = functools.partial(_noisy_dueling_kernel, s_pad=s_pad)

    # NOTE(v5e): if the replay batch ever makes this HBM-write bound, pass
    # out_dtype=jnp.bfloat16 to halve the writeback; f32 kept by default.
    q_full = pl.pallas_call(
        kernel,
        out_shape=jax.ShapeDtypeStruct((b_pad, 128), out_dtype),
        grid_spec=pltpu.PrefetchScalarGridSpec(
            num_scalar_prefetch=0,
            grid=(n_steps,),
            in_specs=[
                pl.BlockSpec((tb, s_pad), lambda i: (i, 0)),      # batch-tiled input
                pl.BlockSpec((n_rows, 128), lambda i: (0, 0)),    # weights: VMEM-resident
            ],
            out_specs=pl.BlockSpec((tb, 128), lambda i: (i, 0)),  # lane-dense output
        ),
        compiler_params=pltpu.CompilerParams(
            dimension_semantics=("parallel",)),
    )(x_p, slab)

    return q_full[:B, :num_actions]


# ----------------------------------------------------------------------------
# Deterministic NoisyLinear parameter construction (synthetic; no checkpoint)
# ----------------------------------------------------------------------------
def _factorized_noise(key, n):
    x = jax.random.normal(key, (n,), dtype=jnp.float32)
    return jnp.sign(x) * jnp.sqrt(jnp.abs(x))


def _noisy_linear_effective(key, in_f, out_f, sigma_init):
    """Effective (weight, bias) = (mu + sigma * eps); weight returned as (in_f, out_f)."""
    k_wmu, k_bmu, k_ein, k_eout = jax.random.split(key, 4)
    mu_range = 1.0 / math.sqrt(in_f)
    w_mu = jax.random.uniform(k_wmu, (out_f, in_f), minval=-mu_range, maxval=mu_range,
                              dtype=jnp.float32)
    b_mu = jax.random.uniform(k_bmu, (out_f,), minval=-mu_range, maxval=mu_range,
                              dtype=jnp.float32)
    w_sigma = jnp.full((out_f, in_f), sigma_init / math.sqrt(in_f), dtype=jnp.float32)
    b_sigma = jnp.full((out_f,), sigma_init / math.sqrt(in_f), dtype=jnp.float32)

    eps_in = _factorized_noise(k_ein, in_f)
    eps_out = _factorized_noise(k_eout, out_f)
    w_eps = jnp.outer(eps_out, eps_in)
    b_eps = eps_out

    w_eff = w_mu + w_sigma * w_eps          # (out_f, in_f)
    b_eff = b_mu + b_sigma * b_eps          # (out_f,)
    return w_eff.T, b_eff.reshape(1, out_f)


def make_params(key, num_states, num_actions, sigma_init=0.4):
    k1, k2, k3, k4, k5 = jax.random.split(key, 5)
    w1, b1 = _noisy_linear_effective(k1, num_states, 128, sigma_init)
    wv1, bv1 = _noisy_linear_effective(k2, 128, 64, sigma_init)
    wv2, bv2 = _noisy_linear_effective(k3, 64, 1, sigma_init)
    wa1, ba1 = _noisy_linear_effective(k4, 128, 64, sigma_init)
    wa2, ba2 = _noisy_linear_effective(k5, 64, num_actions, sigma_init)
    return dict(w1=w1, b1=b1, wv1=wv1, bv1=bv1, wv2=wv2, bv2=bv2,
                wa1=wa1, ba1=ba1, wa2=wa2, ba2=ba2)


def pack_params(p, num_states, num_actions, *, param_dtype=jnp.bfloat16):
    """Fuse streams + dueling combine, fold layer-1 bias into W1, pack into one
    (s_pad+264, 128) slab.  All fusion math is done in f32, then cast once."""
    A = num_actions
    S = num_states
    s_pad = _round_up(S + 1, 8)     # +1 guarantees a spare column for the folded bias

    # layer 1 (state -> 128); row S carries b1 (matched by the ones-column in x)
    w1 = jnp.zeros((s_pad, 128), jnp.float32)
    w1 = w1.at[:S, :].set(p["w1"])
    w1 = w1.at[S:S + 1, :].set(p["b1"])

    # fused value||advantage hidden layer (128 -> 128)
    w_mid = jnp.concatenate([p["wv1"], p["wa1"]], axis=1)                   # (128, 128)
    b_mid = jnp.concatenate([p["bv1"], p["ba1"]], axis=1)                   # (1, 128)

    # fused dueling head: q = value + (adv - mean(adv))
    wv2, bv2 = p["wv2"], p["bv2"]          # (64, 1), (1, 1)
    wa2, ba2 = p["wa2"], p["ba2"]          # (64, A), (1, A)
    w_fin_top = jnp.broadcast_to(wv2, (64, A))                              # value -> every action
    w_fin_bot = wa2 - wa2.mean(axis=1, keepdims=True)                       # centering folded in
    w_fin = jnp.concatenate([w_fin_top, w_fin_bot], axis=0)                 # (128, A)
    b_fin = bv2 + (ba2 - ba2.mean(axis=1, keepdims=True))                   # (1, A)

    # pad head to 128 lanes for a lane-dense output (extra columns are exactly zero)
    w_fin = jnp.pad(w_fin, ((0, 0), (0, 128 - A)))                          # (128, 128)
    b_fin = jnp.pad(b_fin, ((0, 0), (0, 128 - A)))                          # (1, 128)

    bias_block = jnp.concatenate(
        [b_mid, b_fin, jnp.zeros((6, 128), jnp.float32)], axis=0)           # (8, 128)

    slab = jnp.concatenate([w1, w_mid, w_fin, bias_block], axis=0)          # (s_pad+264, 128)
    return slab.astype(param_dtype)


# ----------------------------------------------------------------------------
# Pure-JAX f32 reference (unfused) for correctness check
# ----------------------------------------------------------------------------
def reference_forward(x, p):
    h = jnp.maximum(x @ p["w1"] + p["b1"], 0.0)
    v = jnp.maximum(h @ p["wv1"] + p["bv1"], 0.0) @ p["wv2"] + p["bv2"]
    a = jnp.maximum(h @ p["wa1"] + p["ba1"], 0.0) @ p["wa2"] + p["ba2"]
    return v + (a - a.mean(axis=1, keepdims=True))


if __name__ == "__main__":
    # CartPole-v1: NUM_STATES=4, NUM_ACTIONS=2
    NUM_STATES, NUM_ACTIONS = 4, 2

    key = jax.random.PRNGKey(0)
    k_x, k_p, k_x2 = jax.random.split(key, 3)
    params = make_params(k_p, NUM_STATES, NUM_ACTIONS, sigma_init=0.4)
    slab = pack_params(params, NUM_STATES, NUM_ACTIONS)        # bf16 slab

    # bf16 MXU operands -> loosened tolerance vs the f32 reference
    ATOL = RTOL = 3e-2

    # --- small batch (single grid step) -------------------------------------
    x = jax.random.normal(k_x, (8, NUM_STATES), dtype=jnp.float32)
    q = jax.block_until_ready(noisy_dueling_forward(x, slab, NUM_ACTIONS))
    q_ref = reference_forward(x, params)
    assert q.shape == (8, NUM_ACTIONS)
    assert jnp.allclose(q, q_ref, atol=ATOL, rtol=RTOL)

    # --- larger batch (>= 512 rows -> 2 parallel grid steps, exercises v7x path)
    x2 = jax.random.normal(k_x2, (600, NUM_STATES), dtype=jnp.float32)
    q2 = jax.block_until_ready(noisy_dueling_forward(x2, slab, NUM_ACTIONS))
    q2_ref = reference_forward(x2, params)
    assert q2.shape == (600, NUM_ACTIONS)
    assert jnp.allclose(q2, q2_ref, atol=ATOL, rtol=RTOL)

    print("KERNEL_OK")
</pallas_src>

<mosaic_0001>
module attributes {stable_mosaic.version = 11 : i64} {
  func.func @_noisy_dueling_kernel(%arg0: i32, %arg1: memref<8x8xbf16, #tpu.memory_space<vmem>>, %arg2: memref<272x128xbf16, #tpu.memory_space<vmem>>, %arg3: memref<8x128xf32, #tpu.memory_space<vmem>>) attributes {dimension_semantics = [#tpu.dimension_semantics<parallel>], iteration_bounds = array<i64: 1>, scalar_prefetch = 0 : i64, scratch_operands = 0 : i64, tpu.core_type = #tpu.core_type<tc>, window_params = [{transform_indices = @transform_0, window_bounds = array<i64: 8, 8>}, {pipeline_mode = #tpu.pipeline_mode<synchronous>, transform_indices = @transform_1, window_bounds = array<i64: 272, 128>}, {transform_indices = @transform_2, window_bounds = array<i64: 8, 128>}]} {
    %c0 = arith.constant 0 : index
    %c0_0 = arith.constant 0 : index
    %0 = vector.load %arg1[%c0, %c0_0] : memref<8x8xbf16, #tpu.memory_space<vmem>>, vector<8x8xbf16>
    %c0_1 = arith.constant 0 : index
    %c0_2 = arith.constant 0 : index
    %1 = vector.load %arg2[%c0_1, %c0_2] : memref<272x128xbf16, #tpu.memory_space<vmem>>, vector<8x128xbf16>
    %c8 = arith.constant 8 : index
    %c0_3 = arith.constant 0 : index
    %2 = vector.load %arg2[%c8, %c0_3] : memref<272x128xbf16, #tpu.memory_space<vmem>>, vector<128x128xbf16>
    %c136 = arith.constant 136 : index
    %c0_4 = arith.constant 0 : index
    %3 = vector.load %arg2[%c136, %c0_4] : memref<272x128xbf16, #tpu.memory_space<vmem>>, vector<128x128xbf16>
    %c264 = arith.constant 264 : index
    %c0_5 = arith.constant 0 : index
    %4 = vector.load %arg2[%c264, %c0_5] : memref<272x128xbf16, #tpu.memory_space<vmem>>, vector<8x128xbf16>
    %5 = vector.extract_strided_slice %4 {offsets = [0, 0], sizes = [1, 128], strides = [1, 1]} : vector<8x128xbf16> to vector<1x128xbf16>
    %6 = arith.extf %5 : vector<1x128xbf16> to vector<1x128xf32>
    %7 = vector.extract_strided_slice %4 {offsets = [1, 0], sizes = [1, 128], strides = [1, 1]} : vector<8x128xbf16> to vector<1x128xbf16>
    %8 = arith.extf %7 : vector<1x128xbf16> to vector<1x128xf32>
    %cst = arith.constant dense<0.000000e+00> : vector<8x128xf32>
    %9 = tpu.matmul %0, %1, %cst {dimension_numbers = #tpu.dot_dimension_numbers<[1], [0], [0], [1], [0, 0, 1, 1], [], []>} : vector<8x8xbf16>, vector<8x128xbf16>, vector<8x128xf32> -> vector<8x128xf32>
    %cst_6 = arith.constant 0.000000e+00 : f32
    %10 = vector.broadcast %cst_6 : f32 to vector<8x128xf32>
    %11 = arith.maximumf %9, %10 : vector<8x128xf32>
    %12 = arith.truncf %11 : vector<8x128xf32> to vector<8x128xbf16>
    %cst_7 = arith.constant dense<0.000000e+00> : vector<8x128xf32>
    %13 = tpu.matmul %12, %2, %cst_7 {dimension_numbers = #tpu.dot_dimension_numbers<[1], [0], [0], [1], [0, 0, 1, 1], [], []>} : vector<8x128xbf16>, vector<128x128xbf16>, vector<8x128xf32> -> vector<8x128xf32>
    %14 = vector.broadcast %6 : vector<1x128xf32> to vector<8x128xf32>
    %15 = arith.addf %13, %14 : vector<8x128xf32>
    %cst_8 = arith.constant 0.000000e+00 : f32
    %16 = vector.broadcast %cst_8 : f32 to vector<8x128xf32>
    %17 = arith.maximumf %15, %16 : vector<8x128xf32>
    %18 = arith.truncf %17 : vector<8x128xf32> to vector<8x128xbf16>
    %cst_9 = arith.constant dense<0.000000e+00> : vector<8x128xf32>
    %19 = tpu.matmul %18, %3, %cst_9 {dimension_numbers = #tpu.dot_dimension_numbers<[1], [0], [0], [1], [0, 0, 1, 1], [], []>} : vector<8x128xbf16>, vector<128x128xbf16>, vector<8x128xf32> -> vector<8x128xf32>
    %20 = vector.broadcast %8 : vector<1x128xf32> to vector<8x128xf32>
    %21 = arith.addf %19, %20 : vector<8x128xf32>
    %c0_10 = arith.constant 0 : index
    %c0_11 = arith.constant 0 : index
    %22 = vector.load %arg3[%c0_10, %c0_11] : memref<8x128xf32, #tpu.memory_space<vmem>>, vector<8x128xf32>
    tpu.vector_store %arg3[%c0_10, %c0_11], %21 {strides = array<i32>} : memref<8x128xf32, #tpu.memory_space<vmem>>, vector<8x128xf32>,
    return
  }
  func.func @transform_0(%arg0: i32) -> (i32, i32) {
    %c0_i32 = arith.constant 0 : i32
    %c0_i32_0 = arith.constant 0 : i32
    return %arg0, %c0_i32 : i32, i32
  }
  func.func @transform_1(%arg0: i32) -> (i32, i32) {
    %c0_i32 = arith.constant 0 : i32
    %c0_i32_0 = arith.constant 0 : i32
    %c0_i32_1 = arith.constant 0 : i32
    return %c0_i32, %c0_i32_0 : i32, i32
  }
  func.func @transform_2(%arg0: i32) -> (i32, i32) {
    %c0_i32 = arith.constant 0 : i32
    %c0_i32_0 = arith.constant 0 : i32
    return %arg0, %c0_i32 : i32, i32
  }
}

</mosaic_0001>

<llo_original>
// kernel: tpu_custom_call.1
$region0: #{tpu_custom_call.1}
  #allocation0 [shape = 'u32[]', space=smem, size = 0x4, offset = 0x4, fixed_abs, tag = 'smem constant byte address 0x4 - core index']
  #allocation1 [shape = 'u32[144,128]{1,0:T(1,128)}', space=vmem, size = 0x12000, scoped, tag = 'internal scratch']
  %s0 = inlined_call_operand.hbm [shape: bf16[8,8], index: 0, kind: input, shape index: {}]
  %s1 = inlined_call_operand.hbm [shape: bf16[272,128], index: 1, kind: input, shape index: {}]
  %s2 = inlined_call_operand.hbm [shape: f32[8,128], index: 2, kind: output, shape index: {}]
  %s3 = sld [smem:[#allocation0]]
  $region26: #{tpu_custom_call.1} parent=0
    _
  %s5 = ssub.s32 1, %s3
  %s6 = scalar_select 0, %s5, %s3
  $region1: #{tpu_custom_call.1} parent=0
    #allocation2 [shape = 'u8[2048]{0}', space=vmem, size = 0x800, scoped, tag = 'input window, operand 0, single buffered']
    #allocation3 [shape = 's32[1]{0}', space=sflag, size = 0x4, scoped, tag = 'scoped memory for tpu_custom_call.1']
    #allocation4 [shape = 's32[1]{0}', space=sflag, size = 0x4, scoped, tag = 'scoped memory for tpu_custom_call.1']
    #allocation5 [shape = 'u8[69632]{0}', space=vmem, size = 0x11000, scoped, tag = 'input window, operand 1, single buffered']
    #allocation6 [shape = 's32[1]{0}', space=sflag, size = 0x4, scoped, tag = 'scoped memory for tpu_custom_call.1']
    #allocation7 [shape = 'u8[4096]{0}', space=vmem, size = 0x1000, scoped, tag = 'output window, operand 0, single buffered']
    %7 = vsyncpa [#allocation3], 0
    %8 = vsyncpa [#allocation6], 0
    %9 = vsyncpa [#allocation4], 0
    // Predicated region
    $region2: #{tpu_custom_call.1} parent=1 // pred_check
      _
    $region3: #{tpu_custom_call.1} parent=1 // pred_check_branch
      %11 = sbr.rel (0) target = $region5
    $region4: #{tpu_custom_call.1} parent=1 // pred_region
      %s13 = ssub.s32 64, 64
      %14 = vsyncadd [#allocation3], %s13
      %s16 = sshll.u32 [#allocation2], 4
      %s17 = int_to_ptr.vmem [resolvable:$true] %s16
      %19 = dma.hbm_to_vmem [thread:$0]  %s0, 64, %s17, [#allocation3]
    $region5: #{tpu_custom_call.1} parent=1 // pred_fallthru
      _
    // Predicated region
    $region6: #{tpu_custom_call.1} parent=1 // pred_check
      _
    $region7: #{tpu_custom_call.1} parent=1 // pred_check_branch
      %21 = sbr.rel (0) target = $region9
    $region8: #{tpu_custom_call.1} parent=1 // pred_region
      %s23 = ssub.s32 2176, 2176
      %24 = vsyncadd [#allocation6], %s23
      %s25 = sshll.u32 [#allocation5], 4
      %s26 = int_to_ptr.vmem [resolvable:$true] %s25
      %31 = dma.hbm_to_vmem [thread:$0]  %s1, 2176, %s26, [#allocation6], 64, 64, 4
    $region9: #{tpu_custom_call.1} parent=1 // pred_fallthru
      _
    // Predicated region
    $region10: #{tpu_custom_call.1} parent=1 // pred_check
      _
    $region11: #{tpu_custom_call.1} parent=1 // pred_check_branch
      %33 = sbr.rel (0) target = $region13
    $region12: #{tpu_custom_call.1} parent=1 // pred_region
      %34 = dma.done [#allocation3], 64
    $region13: #{tpu_custom_call.1} parent=1 // pred_fallthru
      _
    // Predicated region
    $region14: #{tpu_custom_call.1} parent=1 // pred_check
      _
    $region15: #{tpu_custom_call.1} parent=1 // pred_check_branch
      %36 = sbr.rel (0) target = $region17
    $region16: #{tpu_custom_call.1} parent=1 // pred_region
      %37 = dma.done [#allocation6], 2176
    $region17: #{tpu_custom_call.1} parent=1 // pred_fallthru
      _
    %v39 = vld [vmem:[#allocation2] sm:$0xf]
    %v40 = vld [vmem:[#allocation5] sm:$0xf]
    %v41 = vld [vmem:[#allocation5 + $0x4] sm:$0xf]
    %v42 = vld [vmem:[#allocation5 + $0x8] sm:$0xf]
    %v43 = vld [vmem:[#allocation5 + $0xc] sm:$0xf]
    %v44 = vld [vmem:[#allocation5 + $0x10] sm:$0xf]
    %v45 = vld [vmem:[#allocation5 + $0x14] sm:$0xf]
    %v46 = vld [vmem:[#allocation5 + $0x18] sm:$0xf]
    %v47 = vld [vmem:[#allocation5 + $0x1c] sm:$0xf]
    %v48 = vld [vmem:[#allocation5 + $0x20] sm:$0xf]
    %v49 = vld [vmem:[#allocation5 + $0x24] sm:$0xf]
    %v50 = vld [vmem:[#allocation5 + $0x28] sm:$0xf]
    %v51 = vld [vmem:[#allocation5 + $0x2c] sm:$0xf]
    %v52 = vld [vmem:[#allocation5 + $0x30] sm:$0xf]
    %v53 = vld [vmem:[#allocation5 + $0x34] sm:$0xf]
    %v54 = vld [vmem:[#allocation5 + $0x38] sm:$0xf]
    %v55 = vld [vmem:[#allocation5 + $0x3c] sm:$0xf]
    %v56 = vld [vmem:[#allocation5 + $0x40] sm:$0xf]
    %v57 = vld [vmem:[#allocation5 + $0x44] sm:$0xf]
    %v58 = vld [vmem:[#allocation5 + $0x48] sm:$0xf]
    %v59 = vld [vmem:[#allocation5 + $0x4c] sm:$0xf]
    %v60 = vld [vmem:[#allocation5 + $0x50] sm:$0xf]
    %v61 = vld [vmem:[#allocation5 + $0x54] sm:$0xf]
    %v62 = vld [vmem:[#allocation5 + $0x58] sm:$0xf]
    %v63 = vld [vmem:[#allocation5 + $0x5c] sm:$0xf]
    %v64 = vld [vmem:[#allocation5 + $0x60] sm:$0xf]
    %v65 = vld [vmem:[#allocation5 + $0x64] sm:$0xf]
    %v66 = vld [vmem:[#allocation5 + $0x68] sm:$0xf]
    %v67 = vld [vmem:[#allocation5 + $0x6c] sm:$0xf]
    %v68 = vld [vmem:[#allocation5 + $0x70] sm:$0xf]
    %v69 = vld [vmem:[#allocation5 + $0x74] sm:$0xf]
    %v70 = vld [vmem:[#allocation5 + $0x78] sm:$0xf]
    %v71 = vld [vmem:[#allocation5 + $0x7c] sm:$0xf]
    %v72 = vld [vmem:[#allocation5 + $0x80] sm:$0xf]
    %v73 = vld [vmem:[#allocation5 + $0x84] sm:$0xf]
    %v74 = vunpack.c.l.bf16 %v73
    %vm75 = vcmask 64512
    %v77 = vsel %vm75, %v39, 0
    %vm79 = vcmask 1043456
    %v81 = vsel %vm79, %v40, 0
    %83 = vmatprep.subr.bf16.mxu0 0
    %84 = vmatpush1.bf16.msra.mxu0 %v81
    %85 = vmatprep.subr.bf16.mxu0 0
    %86 = vmatpush1.bf16.msra.mxu0 0
    %87 = vmatprep.subr.bf16.mxu0 0
    %88 = vmatpush1.bf16.msra.mxu0 0
    %89 = vmatprep.subr.bf16.mxu0 0
    %90 = vmatpush1.bf16.msra.mxu0 0
    %91 = vmatprep.subr.bf16.mxu0 0
    %92 = vmatpush1.bf16.msra.mxu0 0
    %93 = vmatprep.subr.bf16.mxu0 0
    %94 = vmatpush1.bf16.msra.mxu0 0
    %95 = vmatprep.subr.bf16.mxu0 0
    %96 = vmatpush1.bf16.msra.mxu0 0
    %97 = vmatprep.subr.bf16.mxu0 0
    %98 = vmatpush1.bf16.msra.mxu0 0
    %99 = vmatprep.subr.bf16.mxu0 0
    %100 = vmatpush1.bf16.msra.mxu0 0
    %101 = vmatprep.subr.bf16.mxu0 0
    %102 = vmatpush1.bf16.msra.mxu0 0
    %103 = vmatprep.subr.bf16.mxu0 0
    %104 = vmatpush1.bf16.msra.mxu0 0
    %105 = vmatprep.subr.bf16.mxu0 0
    %106 = vmatpush1.bf16.msra.mxu0 0
    %107 = vmatprep.subr.bf16.mxu0 0
    %108 = vmatpush1.bf16.msra.mxu0 0
    %109 = vmatprep.subr.bf16.mxu0 0
    %110 = vmatpush1.bf16.msra.mxu0 0
    %111 = vmatprep.subr.bf16.mxu0 0
    %112 = vmatpush1.bf16.msra.mxu0 0
    %113 = vmatprep.subr.bf16.mxu0 0
    %114 = vmatpush1.bf16.msra.mxu0 0
    %115 = vmatprep.mubr.bf16.mxu0 0
    %116 = vmatmul.mubr.bf16.gmra.mrb[0].mxu0 %v77
    %v117 = vpop.f32.mrb[0].mxu0
    %v118 = vadd.f32 0.0, %v117
    %v119 = vpop.f32.mrb[0].mxu0
    %v120 = vpop.f32.mrb[0].mxu0
    %v121 = vpop.f32.mrb[0].mxu0
    %122 = vdwg.mxu0
    %v123 = vmax.f32 %v118, 0.0
    %v124 = vpack.c.bf16 %v123, %v123
    %v125 = vlaneseq
    %v126 = vshrl.u32 %v125, 7
    %v127 = vsub.s32 0, %v126
    %v128 = vrot.slane %v74, %v127
    %v145 = vunpack.c.l.b16 %v41
    %v146 = vunpack.c.l.b16 %v42
    %v147 = vunpack.c.l.b16 %v43
    %v148 = vunpack.c.l.b16 %v44
    %v149 = vunpack.c.l.b16 %v45
    %v150 = vunpack.c.l.b16 %v46
    %v151 = vunpack.c.l.b16 %v47
    %v152 = vunpack.c.l.b16 %v48
    %v153 = vunpack.c.l.b16 %v49
    %v154 = vunpack.c.l.b16 %v50
    %v155 = vunpack.c.l.b16 %v51
    %v156 = vunpack.c.l.b16 %v52
    %v157 = vunpack.c.l.b16 %v53
    %v158 = vunpack.c.l.b16 %v54
    %v159 = vunpack.c.l.b16 %v55
    %v160 = vunpack.c.l.b16 %v56
    %v161 = vpack.c.b16 %v146, %v145
    %v162 = vpack.c.b16 %v148, %v147
    %v163 = vpack.c.b16 %v150, %v149
    %v164 = vpack.c.b16 %v152, %v151
    %v165 = vpack.c.b16 %v154, %v153
    %v166 = vpack.c.b16 %v156, %v155
    %v167 = vpack.c.b16 %v158, %v157
    %v168 = vpack.c.b16 %v160, %v159
    %177 = vmatprep.subr.bf16.mxu0 0
    %178 = vmatpush1.bf16.msra.mxu0 %v161
    %179 = vmatprep.subr.bf16.mxu0 0
    %180 = vmatpush1.bf16.msra.mxu0 %v162
    %181 = vmatprep.subr.bf16.mxu0 0
    %182 = vmatpush1.bf16.msra.mxu0 %v163
    %183 = vmatprep.subr.bf16.mxu0 0
    %184 = vmatpush1.bf16.msra.mxu0 %v164
    %185 = vmatprep.subr.bf16.mxu0 0
    %186 = vmatpush1.bf16.msra.mxu0 %v165
    %187 = vmatprep.subr.bf16.mxu0 0
    %188 = vmatpush1.bf16.msra.mxu0 %v166
    %189 = vmatprep.subr.bf16.mxu0 0
    %190 = vmatpush1.bf16.msra.mxu0 %v167
    %191 = vmatprep.subr.bf16.mxu0 0
    %192 = vmatpush1.bf16.msra.mxu0 %v168
    %193 = vmatprep.subr.bf16.mxu0 0
    %194 = vmatpush1.bf16.msra.mxu0 0
    %195 = vmatprep.subr.bf16.mxu0 0
    %196 = vmatpush1.bf16.msra.mxu0 0
    %197 = vmatprep.subr.bf16.mxu0 0
    %198 = vmatpush1.bf16.msra.mxu0 0
    %199 = vmatprep.subr.bf16.mxu0 0
    %200 = vmatpush1.bf16.msra.mxu0 0
    %201 = vmatprep.subr.bf16.mxu0 0
    %202 = vmatpush1.bf16.msra.mxu0 0
    %203 = vmatprep.subr.bf16.mxu0 0
    %204 = vmatpush1.bf16.msra.mxu0 0
    %205 = vmatprep.subr.bf16.mxu0 0
    %206 = vmatpush1.bf16.msra.mxu0 0
    %207 = vmatprep.subr.bf16.mxu0 0
    %208 = vmatpush1.bf16.msra.mxu0 0
    %209 = vmatprep.mubr.bf16.mxu0 0
    %210 = vmatmul.mubr.bf16.gmra.mrb[0].mxu0 %v124
    %v211 = vpop.f32.mrb[0].mxu0
    %v212 = vadd.f32 %v128, %v211
    %v213 = vpop.f32.mrb[0].mxu0
    %v214 = vpop.f32.mrb[0].mxu0
    %v215 = vpop.f32.mrb[0].mxu0
    %216 = vdwg.mxu0
    %v217 = vmax.f32 %v212, 0.0
    %v218 = vpack.c.bf16 %v217, %v217
    %v219 = vlaneseq
    %v220 = vshrl.u32 %v219, 7
    %v221 = vsub.s32 1, %v220
    %v222 = vrot.slane %v74, %v221
    %v239 = vunpack.c.l.b16 %v57
    %v240 = vunpack.c.l.b16 %v58
    %v241 = vunpack.c.l.b16 %v59
    %v242 = vunpack.c.l.b16 %v60
    %v243 = vunpack.c.l.b16 %v61
    %v244 = vunpack.c.l.b16 %v62
    %v245 = vunpack.c.l.b16 %v63
    %v246 = vunpack.c.l.b16 %v64
    %v247 = vunpack.c.l.b16 %v65
    %v248 = vunpack.c.l.b16 %v66
    %v249 = vunpack.c.l.b16 %v67
    %v250 = vunpack.c.l.b16 %v68
    %v251 = vunpack.c.l.b16 %v69
    %v252 = vunpack.c.l.b16 %v70
    %v253 = vunpack.c.l.b16 %v71
    %v254 = vunpack.c.l.b16 %v72
    %v255 = vpack.c.b16 %v240, %v239
    %v256 = vpack.c.b16 %v242, %v241
    %v257 = vpack.c.b16 %v244, %v243
    %v258 = vpack.c.b16 %v246, %v245
    %v259 = vpack.c.b16 %v248, %v247
    %v260 = vpack.c.b16 %v250, %v249
    %v261 = vpack.c.b16 %v252, %v251
    %v262 = vpack.c.b16 %v254, %v253
    %271 = vmatprep.subr.bf16.mxu0 0
    %272 = vmatpush1.bf16.msra.mxu0 %v255
    %273 = vmatprep.subr.bf16.mxu0 0
    %274 = vmatpush1.bf16.msra.mxu0 %v256
    %275 = vmatprep.subr.bf16.mxu0 0
    %276 = vmatpush1.bf16.msra.mxu0 %v257
    %277 = vmatprep.subr.bf16.mxu0 0
    %278 = vmatpush1.bf16.msra.mxu0 %v258
    %279 = vmatprep.subr.bf16.mxu0 0
    %280 = vmatpush1.bf16.msra.mxu0 %v259
    %281 = vmatprep.subr.bf16.mxu0 0
    %282 = vmatpush1.bf16.msra.mxu0 %v260
    %283 = vmatprep.subr.bf16.mxu0 0
    %284 = vmatpush1.bf16.msra.mxu0 %v261
    %285 = vmatprep.subr.bf16.mxu0 0
    %286 = vmatpush1.bf16.msra.mxu0 %v262
    %287 = vmatprep.subr.bf16.mxu0 0
    %288 = vmatpush1.bf16.msra.mxu0 0
    %289 = vmatprep.subr.bf16.mxu0 0
    %290 = vmatpush1.bf16.msra.mxu0 0
    %291 = vmatprep.subr.bf16.mxu0 0
    %292 = vmatpush1.bf16.msra.mxu0 0
    %293 = vmatprep.subr.bf16.mxu0 0
    %294 = vmatpush1.bf16.msra.mxu0 0
    %295 = vmatprep.subr.bf16.mxu0 0
    %296 = vmatpush1.bf16.msra.mxu0 0
    %297 = vmatprep.subr.bf16.mxu0 0
    %298 = vmatpush1.bf16.msra.mxu0 0
    %299 = vmatprep.subr.bf16.mxu0 0
    %300 = vmatpush1.bf16.msra.mxu0 0
    %301 = vmatprep.subr.bf16.mxu0 0
    %302 = vmatpush1.bf16.msra.mxu0 0
    %303 = vmatprep.mubr.bf16.mxu0 0
    %304 = vmatmul.mubr.bf16.gmra.mrb[0].mxu0 %v218
    %v305 = vpop.f32.mrb[0].mxu0
    %v306 = vadd.f32 %v222, %v305
    %v307 = vpop.f32.mrb[0].mxu0
    %v308 = vpop.f32.mrb[0].mxu0
    %v309 = vpop.f32.mrb[0].mxu0
    %310 = vdwg.mxu0
    %311 = vst [vmem:[#allocation7] sm:$0xff] %v306
    // Predicated region
    $region18: #{tpu_custom_call.1} parent=1 // pred_check
      _
    $region19: #{tpu_custom_call.1} parent=1 // pred_check_branch
      %313 = sbr.rel (0) target = $region21
    $region20: #{tpu_custom_call.1} parent=1 // pred_region
      %s315 = ssub.s32 128, 128
      %316 = vsyncadd [#allocation4], %s315
      %s318 = sshll.u32 [#allocation7], 4
      %s319 = int_to_ptr.vmem [resolvable:$true] %s318
      %321 = dma.vmem_to_hbm [thread:$0]  %s319, 128, %s2, [#allocation4]
    $region21: #{tpu_custom_call.1} parent=1 // pred_fallthru
      _
    // Predicated region
    $region22: #{tpu_custom_call.1} parent=1 // pred_check
      _
    $region23: #{tpu_custom_call.1} parent=1 // pred_check_branch
      %323 = sbr.rel (0) target = $region25
    $region24: #{tpu_custom_call.1} parent=1 // pred_region
      %324 = dma.done [#allocation4], 128
    $region25: #{tpu_custom_call.1} parent=1 // pred_fallthru
      _
    %325 = vsyncpa [#allocation3], 1
    %326 = vsyncpa [#allocation6], 1
    %327 = vsyncpa [#allocation4], 1

</llo_original>
